<compile_context>
chip_gen: v7x
topology: tpu7x:2x2x1
jax: 0.10.0
libtpu: 0.0.40
codegen_flags: <defaults>
</compile_context>

<pallas_src>
import math

import jax
import jax.numpy as jnp
import numpy as np
from jax.experimental import pallas as pl
from jax.experimental.pallas import tpu as pltpu

SQRT2 = math.sqrt(2.0)
LRELU_SLOPE = 0.2
IN_EPS = 1e-5


def _round_up(v, m):
    return (v + m - 1) // m * m


# ----------------------------------------------------------------------------
# Constant builders (host-side numpy, one-time)
# ----------------------------------------------------------------------------
def _tap_mask_base(Hc, Wc, frame):
    """(3,3,frame) 0/1 masks: tap (kh,kw) valid at output pixel (h,w)."""
    base = np.zeros((3, 3, frame), np.float32)
    for kh in range(3):
        for kw in range(3):
            dy, dx = kh - 1, kw - 1
            for h in range(Hc):
                if not (0 <= h + dy < Hc):
                    continue
                for w in range(Wc):
                    if 0 <= w + dx < Wc:
                        base[kh, kw, h * Wc + w] = 1.0
    return base


def _pack_tap_mask(Hc, Wc, frame, rows):
    """(9*rows, frame) mask, rows ordered [kw-group, kh-group, channel-row]."""
    base = _tap_mask_base(Hc, Wc, frame)
    M = np.zeros((3, 3, rows, frame), np.float32)
    for kw in range(3):
        for kh in range(3):
            M[kw, kh, :, :] = base[kh, kw][None, :]
    return M.reshape(9 * rows, frame)


def _pack_conv_weight(w_hwio, ipb):
    """(3,3,Ci,Co) HWIO -> (ipb*Co, 9*ipb*Ci) block-diag, columns ordered
    [kw-group, kh-group, image, ci] to match the kernel's stacked tap operand."""
    w = np.asarray(w_hwio, np.float32)
    ci, co = w.shape[2], w.shape[3]
    IC = ipb * ci
    Wb = np.zeros((ipb * co, 9 * IC), np.float32)
    for n in range(ipb):
        for kw in range(3):
            for kh in range(3):
                col0 = kw * (3 * IC) + kh * IC + n * ci
                Wb[n * co:(n + 1) * co, col0:col0 + ci] = w[kh, kw].T
    return Wb


def _pack_pointwise_weight(wsc, ipb):
    """(Cin,Cout) 1x1 conv weight -> block-diagonal (ipb*Cout, ipb*Cin)."""
    w = np.asarray(wsc, np.float32).T          # (Cout, Cin)
    co, ci = w.shape
    Wb = np.zeros((ipb * co, ipb * ci), np.float32)
    for n in range(ipb):
        Wb[n * co:(n + 1) * co, n * ci:(n + 1) * ci] = w
    return Wb


def _build_pool_matrix(H, W, mode, frame_in, frame_out):
    """(frame_in, frame_out) P such that pooled = x @ P for x:(rows, frame_in)."""
    Ho = H // 2
    Wo = W // 2 if mode == "half" else W
    scale = 0.25 if mode == "half" else 0.5
    P = np.zeros((frame_in, frame_out), np.float32)
    for h in range(H):
        ho = h // 2
        for w in range(W):
            wo = w // 2 if mode == "half" else w
            P[h * W + w, ho * Wo + wo] = scale
    return P


# ----------------------------------------------------------------------------
# Pallas kernel
# ----------------------------------------------------------------------------
def make_resblk_kernel(Cin, Cout, ipb, HW, HWp, frame1, frame2, Wc1, Wc2, *,
                       normalize, learned_sc, pool, padded1):
    IC = ipb * Cin          # stacked input-channel rows per block
    OC = ipb * Cout         # stacked output-channel rows per block
    K = 9 * IC              # fused contraction dim (taps x channels x images)
    inv_hw = 1.0 / HW
    inv_hwp = 1.0 / HWp
    inv_sqrt2 = 1.0 / SQRT2

    def leaky(v):
        return jnp.where(v >= 0, v, LRELU_SLOPE * v)

    def inorm(v, g, b, inv_n):
        # single-pass stats (padding lanes are zero); clamp cancellation.
        s1 = jnp.sum(v, axis=1, keepdims=True)
        s2 = jnp.sum(v * v, axis=1, keepdims=True)
        mu = s1 * inv_n
        var = jnp.maximum(s2 * inv_n - mu * mu, 0.0)
        return (v - mu) * jax.lax.rsqrt(var + IN_EPS) * g + b

    def conv3x3(v, w_big, bias, mask_big, Wc, frame):
        # v: (IC, frame). 4 roll issues + 1 fused (OC, K) x (K, frame) MXU dot.
        up = pltpu.roll(v, shift=Wc, axis=1)                 # kh=0 sources
        dn = pltpu.roll(v, shift=frame - Wc, axis=1)         # kh=2 sources
        rows3 = jnp.concatenate([up, v, dn], axis=0)         # (3*IC, frame)
        left = pltpu.roll(rows3, shift=1, axis=1)            # kw=0 sources
        right = pltpu.roll(rows3, shift=frame - 1, axis=1)   # kw=2 sources
        taps = jnp.concatenate([left, rows3, right], axis=0) * mask_big
        y = jnp.dot(w_big, taps, preferred_element_type=jnp.float32)
        return y + bias

    def kernel(*refs):
        x_ref, cvec_ref, w_ref, m_ref = refs[:4]
        p_ref = refs[4] if pool else None
        out_ref = refs[-1]

        x = x_ref[0]                                   # (IC, frame1)

        # packed per-channel parameters (column vectors, broadcast over lanes)
        b1 = cvec_ref[4][:IC]
        b2 = cvec_ref[5][:OC]
        if normalize:
            g1, be1 = cvec_ref[0][:IC], cvec_ref[1][:IC]
            g2, be2 = cvec_ref[2][:IC], cvec_ref[3][:IC]

        # packed weights
        w1 = w_ref[0][:IC, :K]
        w2 = w_ref[1][:OC, :K]

        # packed, pre-broadcast tap masks
        m1 = m_ref[0]
        m2 = m_ref[1][:, :frame2] if frame2 != frame1 else m_ref[1]

        # ---- shortcut path --------------------------------------------------
        sc = x
        if learned_sc:
            wsc = w_ref[2][:OC, :IC]
            sc = jnp.dot(wsc, sc, preferred_element_type=jnp.float32)

        # ---- residual path --------------------------------------------------
        r = x
        if normalize:
            r = inorm(r, g1, be1, inv_hw)
        r = leaky(r)
        r = conv3x3(r, w1, b1, m1, Wc1, frame1)

        if pool:
            # pool shortcut and residual with a single MXU push
            both = jnp.concatenate([sc, r], axis=0)          # (OC+IC, frame1)
            both = jnp.dot(both, p_ref[...], preferred_element_type=jnp.float32)
            sc = both[:OC]
            r = both[OC:]
        elif padded1 and normalize:
            # zero frame-padding lanes (carry conv1 bias) before norm2 stats
            lane = jax.lax.broadcasted_iota(jnp.int32, r.shape, 1)
            r = jnp.where(lane < HW, r, 0.0)

        if normalize:
            r = inorm(r, g2, be2, inv_hwp)
        r = leaky(r)
        r = conv3x3(r, w2, b2, m2, Wc2, frame2)

        # lane-dense unmasked store of the full padded slab
        out_ref[0] = ((sc + r) * inv_sqrt2).astype(out_ref.dtype)

    return kernel


# ----------------------------------------------------------------------------
# Wrapper (NCHW in / NCHW out, like the PyTorch module)
# ----------------------------------------------------------------------------
def _tensorcores_per_chip():
    try:
        kind = jax.devices()[0].device_kind.lower()
    except Exception:
        return 1
    # chips where a "parallel" grid axis is sharded across 2 TensorCores
    return 2 if ("v7" in kind or "v4" in kind or "v5p" in kind) else 1


def resblk_pallas(x_nchw, p, *, normalize, downsample, imgs_per_block=None):
    N, Cin, H, W = x_nchw.shape
    Cout = p["w2"].shape[-1]
    learned_sc = Cin != Cout
    pool = downsample != "none"
    if downsample == "half":
        assert H % 2 == 0 and W % 2 == 0
        Ho, Wo = H // 2, W // 2
    elif downsample == "timepreserve":
        assert H % 2 == 0
        Ho, Wo = H // 2, W
    else:
        Ho, Wo = H, W

    HW, HWp = H * W, Ho * Wo
    frame1 = _round_up(HW, 128)                 # lane frame for conv1
    frame2 = _round_up(HWp, 128) if pool else frame1

    # images per block: fill sublanes / cut grid steps on 1-TC chips (v5e/v6e),
    # keep one block per TensorCore on 2-TC chips (v7x).
    if imgs_per_block is None:
        n_tc = _tensorcores_per_chip()
        ipb = max(1, N // n_tc) if n_tc > 1 else N
        ipb = min(ipb, 8)
    else:
        ipb = max(1, int(imgs_per_block))
    while N % ipb != 0:
        ipb -= 1
    nblk = N // ipb
    IC, OC = ipb * Cin, ipb * Cout
    K = 9 * IC

    # NCHW -> (nblk, ipb*Cin, frame1): contiguous reshapes + lane pad only.
    x = x_nchw.reshape(N, Cin, HW).astype(jnp.float32)
    if frame1 != HW:
        x = jnp.pad(x, ((0, 0), (0, 0), (0, frame1 - HW)))
    x = x.reshape(nblk, IC, frame1)

    # ---- packed constants (3 slabs + optional pooling matrix) ---------------
    Crow = _round_up(max(IC, OC), 8)
    cvec = np.zeros((6, Crow, 1), np.float32)
    if normalize:
        cvec[0, :IC, 0] = np.tile(np.asarray(p["g1"], np.float32).reshape(-1), ipb)
        cvec[1, :IC, 0] = np.tile(np.asarray(p["be1"], np.float32).reshape(-1), ipb)
        cvec[2, :IC, 0] = np.tile(np.asarray(p["g2"], np.float32).reshape(-1), ipb)
        cvec[3, :IC, 0] = np.tile(np.asarray(p["be2"], np.float32).reshape(-1), ipb)
    cvec[4, :IC, 0] = np.tile(np.asarray(p["b1"], np.float32).reshape(-1), ipb)
    cvec[5, :OC, 0] = np.tile(np.asarray(p["b2"], np.float32).reshape(-1), ipb)

    Rw = _round_up(max(IC, OC), 8)
    Kw = _round_up(K, 128)
    wslab = np.zeros((3, Rw, Kw), np.float32)
    wslab[0, :IC, :K] = _pack_conv_weight(p["w1"], ipb)
    wslab[1, :OC, :K] = _pack_conv_weight(p["w2"], ipb)
    if learned_sc:
        wslab[2, :OC, :IC] = _pack_pointwise_weight(p["wsc"], ipb)

    masks = np.zeros((2, K, frame1), np.float32)
    masks[0] = _pack_tap_mask(H, W, frame1, IC)
    masks[1, :, :frame2] = _pack_tap_mask(Ho, Wo, frame2, IC)

    inputs = [x, jnp.asarray(cvec), jnp.asarray(wslab), jnp.asarray(masks)]
    in_specs = [
        pl.BlockSpec((1, IC, frame1), lambda n: (n, 0, 0)),
        pl.BlockSpec((6, Crow, 1), lambda n: (0, 0, 0)),
        pl.BlockSpec((3, Rw, Kw), lambda n: (0, 0, 0)),
        pl.BlockSpec((2, K, frame1), lambda n: (0, 0, 0)),
    ]
    if pool:
        P = _build_pool_matrix(H, W, downsample, frame1, frame2)
        inputs.append(jnp.asarray(P))
        in_specs.append(pl.BlockSpec((frame1, frame2), lambda n: (0, 0)))

    kernel = make_resblk_kernel(
        Cin, Cout, ipb, HW, HWp, frame1, frame2, W, Wo,
        normalize=normalize, learned_sc=learned_sc, pool=pool,
        padded1=(frame1 != HW))

    out = pl.pallas_call(
        kernel,
        grid=(nblk,),
        in_specs=in_specs,
        out_specs=pl.BlockSpec((1, OC, frame2), lambda n: (n, 0, 0)),
        out_shape=jax.ShapeDtypeStruct((nblk, OC, frame2), jnp.float32),
        compiler_params=pltpu.CompilerParams(
            dimension_semantics=("parallel",)),
    )(*inputs)

    # lane-dense padded slab back to NCHW: free reshapes + one tiny XLA slice.
    out = out.reshape(N, Cout, frame2)[:, :, :HWp]
    return out.reshape(N, Cout, Ho, Wo)


# ----------------------------------------------------------------------------
# Pure-JAX reference (for correctness check only)
# ----------------------------------------------------------------------------
def resblk_ref(x_nchw, p, *, normalize, downsample):
    x = jnp.transpose(x_nchw, (0, 2, 3, 1)).astype(jnp.float32)  # NHWC
    Cin = x.shape[-1]
    Cout = p["w2"].shape[-1]
    learned_sc = Cin != Cout

    def leaky(v):
        return jnp.where(v >= 0, v, LRELU_SLOPE * v)

    def conv(v, w, b=None):
        y = jax.lax.conv_general_dilated(
            v, w, (1, 1), "SAME", dimension_numbers=("NHWC", "HWIO", "NHWC"))
        if b is not None:
            y = y + b.reshape(1, 1, 1, -1)
        return y

    def pool(v):
        if downsample == "none":
            return v
        n, h, w, c = v.shape
        if downsample == "timepreserve":
            return v.reshape(n, h // 2, 2, w, c).mean(axis=2)
        return v.reshape(n, h // 2, 2, w // 2, 2, c).mean(axis=(2, 4))

    def inorm(v, g, b):
        mu = v.mean(axis=(1, 2), keepdims=True)
        var = ((v - mu) ** 2).mean(axis=(1, 2), keepdims=True)
        return ((v - mu) * jax.lax.rsqrt(var + IN_EPS)
                * g.reshape(1, 1, 1, -1) + b.reshape(1, 1, 1, -1))

    sc = x
    if learned_sc:
        sc = conv(sc, p["wsc"].reshape(1, 1, Cin, Cout))
    sc = pool(sc)

    r = x
    if normalize:
        r = inorm(r, p["g1"], p["be1"])
    r = leaky(r)
    r = conv(r, p["w1"], p["b1"])
    r = pool(r)
    if normalize:
        r = inorm(r, p["g2"], p["be2"])
    r = leaky(r)
    r = conv(r, p["w2"], p["b2"])

    return jnp.transpose((sc + r) / SQRT2, (0, 3, 1, 2))


# ----------------------------------------------------------------------------
if __name__ == "__main__":
    N, Cin, Cout, H, W = 2, 4, 8, 16, 16
    normalize, downsample = True, "half"

    key = jax.random.PRNGKey(0)
    ks = jax.random.split(key, 10)
    x = jax.random.normal(ks[0], (N, Cin, H, W), jnp.float32)

    # Deterministic synthetic parameters.  Conv weights are stored HWIO
    # (kh, kw, Cin, Cout); the 1x1 shortcut weight as (Cin, Cout) (no bias).
    params = dict(
        g1=1.0 + 0.1 * jax.random.normal(ks[1], (1, Cin), jnp.float32),
        be1=0.1 * jax.random.normal(ks[2], (1, Cin), jnp.float32),
        g2=1.0 + 0.1 * jax.random.normal(ks[3], (1, Cin), jnp.float32),
        be2=0.1 * jax.random.normal(ks[4], (1, Cin), jnp.float32),
        w1=0.2 * jax.random.normal(ks[5], (3, 3, Cin, Cin), jnp.float32),
        b1=0.1 * jax.random.normal(ks[6], (1, Cin), jnp.float32),
        w2=0.2 * jax.random.normal(ks[7], (3, 3, Cin, Cout), jnp.float32),
        b2=0.1 * jax.random.normal(ks[8], (1, Cout), jnp.float32),
        wsc=0.2 * jax.random.normal(ks[9], (Cin, Cout), jnp.float32),
    )

    ref = np.asarray(jax.block_until_ready(
        resblk_ref(x, params, normalize=normalize, downsample=downsample)))

    # auto layout: grid=(N,) on 2-TC chips, batch merged into sublanes on 1-TC chips
    out = resblk_pallas(x, params, normalize=normalize, downsample=downsample)
    out = np.asarray(jax.block_until_ready(out))
    np.testing.assert_allclose(out, ref, rtol=1e-4, atol=2e-5)

    # explicitly exercise both block layouts regardless of the chip we run on
    for ipb in (1, 2):
        o = resblk_pallas(x, params, normalize=normalize, downsample=downsample,
                          imgs_per_block=ipb)
        o = np.asarray(jax.block_until_ready(o))
        np.testing.assert_allclose(o, ref, rtol=1e-4, atol=2e-5)

    print("KERNEL_OK")
</pallas_src>

<mosaic_0001>
module attributes {stable_mosaic.version = 11 : i64} {
  func.func @kernel(%arg0: i32, %arg1: memref<1x8x256xf32, #tpu.memory_space<vmem>>, %arg2: memref<6x16x1xf32, #tpu.memory_space<vmem>>, %arg3: memref<3x16x128xf32, #tpu.memory_space<vmem>>, %arg4: memref<2x72x256xf32, #tpu.memory_space<vmem>>, %arg5: memref<256x128xf32, #tpu.memory_space<vmem>>, %arg6: memref<1x16x128xf32, #tpu.memory_space<vmem>>) attributes {dimension_semantics = [#tpu.dimension_semantics<parallel>], iteration_bounds = array<i64: 1>, scalar_prefetch = 0 : i64, scratch_operands = 0 : i64, tpu.core_type = #tpu.core_type<tc>, window_params = [{transform_indices = @transform_0, window_bounds = array<i64: 1, 8, 256>}, {pipeline_mode = #tpu.pipeline_mode<synchronous>, transform_indices = @transform_1, window_bounds = array<i64: 6, 16, 1>}, {pipeline_mode = #tpu.pipeline_mode<synchronous>, transform_indices = @transform_2, window_bounds = array<i64: 3, 16, 128>}, {pipeline_mode = #tpu.pipeline_mode<synchronous>, transform_indices = @transform_3, window_bounds = array<i64: 2, 72, 256>}, {pipeline_mode = #tpu.pipeline_mode<synchronous>, transform_indices = @transform_4, window_bounds = array<i64: 256, 128>}, {transform_indices = @transform_5, window_bounds = array<i64: 1, 16, 128>}]} {
    %c0 = arith.constant 0 : index
    %c0_0 = arith.constant 0 : index
    %c0_1 = arith.constant 0 : index
    %0 = vector.load %arg1[%c0, %c0_0, %c0_1] : memref<1x8x256xf32, #tpu.memory_space<vmem>>, vector<1x8x256xf32>
    %1 = vector.shape_cast %0 : vector<1x8x256xf32> to vector<8x256xf32>
    %c4 = arith.constant 4 : index
    %c0_2 = arith.constant 0 : index
    %c0_3 = arith.constant 0 : index
    %2 = vector.load %arg2[%c4, %c0_2, %c0_3] : memref<6x16x1xf32, #tpu.memory_space<vmem>>, vector<1x16x1xf32>
    %3 = vector.shape_cast %2 : vector<1x16x1xf32> to vector<16x1xf32>
    %4 = vector.extract_strided_slice %3 {offsets = [0, 0], sizes = [8, 1], strides = [1, 1]} : vector<16x1xf32> to vector<8x1xf32>
    %c5 = arith.constant 5 : index
    %c0_4 = arith.constant 0 : index
    %c0_5 = arith.constant 0 : index
    %5 = vector.load %arg2[%c5, %c0_4, %c0_5] : memref<6x16x1xf32, #tpu.memory_space<vmem>>, vector<1x16x1xf32>
    %6 = vector.shape_cast %5 : vector<1x16x1xf32> to vector<16x1xf32>
    %c0_6 = arith.constant 0 : index
    %c0_7 = arith.constant 0 : index
    %c0_8 = arith.constant 0 : index
    %7 = vector.load %arg2[%c0_6, %c0_7, %c0_8] : memref<6x16x1xf32, #tpu.memory_space<vmem>>, vector<1x16x1xf32>
    %8 = vector.shape_cast %7 : vector<1x16x1xf32> to vector<16x1xf32>
    %9 = vector.extract_strided_slice %8 {offsets = [0, 0], sizes = [8, 1], strides = [1, 1]} : vector<16x1xf32> to vector<8x1xf32>
    %c1 = arith.constant 1 : index
    %c0_9 = arith.constant 0 : index
    %c0_10 = arith.constant 0 : index
    %10 = vector.load %arg2[%c1, %c0_9, %c0_10] : memref<6x16x1xf32, #tpu.memory_space<vmem>>, vector<1x16x1xf32>
    %11 = vector.shape_cast %10 : vector<1x16x1xf32> to vector<16x1xf32>
    %12 = vector.extract_strided_slice %11 {offsets = [0, 0], sizes = [8, 1], strides = [1, 1]} : vector<16x1xf32> to vector<8x1xf32>
    %c2 = arith.constant 2 : index
    %c0_11 = arith.constant 0 : index
    %c0_12 = arith.constant 0 : index
    %13 = vector.load %arg2[%c2, %c0_11, %c0_12] : memref<6x16x1xf32, #tpu.memory_space<vmem>>, vector<1x16x1xf32>
    %14 = vector.shape_cast %13 : vector<1x16x1xf32> to vector<16x1xf32>
    %15 = vector.extract_strided_slice %14 {offsets = [0, 0], sizes = [8, 1], strides = [1, 1]} : vector<16x1xf32> to vector<8x1xf32>
    %c3 = arith.constant 3 : index
    %c0_13 = arith.constant 0 : index
    %c0_14 = arith.constant 0 : index
    %16 = vector.load %arg2[%c3, %c0_13, %c0_14] : memref<6x16x1xf32, #tpu.memory_space<vmem>>, vector<1x16x1xf32>
    %17 = vector.shape_cast %16 : vector<1x16x1xf32> to vector<16x1xf32>
    %18 = vector.extract_strided_slice %17 {offsets = [0, 0], sizes = [8, 1], strides = [1, 1]} : vector<16x1xf32> to vector<8x1xf32>
    %c0_15 = arith.constant 0 : index
    %c0_16 = arith.constant 0 : index
    %c0_17 = arith.constant 0 : index
    %19 = vector.load %arg3[%c0_15, %c0_16, %c0_17] : memref<3x16x128xf32, #tpu.memory_space<vmem>>, vector<1x16x128xf32>
    %20 = vector.shape_cast %19 : vector<1x16x128xf32> to vector<16x128xf32>
    %21 = vector.extract_strided_slice %20 {offsets = [0, 0], sizes = [8, 72], strides = [1, 1]} : vector<16x128xf32> to vector<8x72xf32>
    %c1_18 = arith.constant 1 : index
    %c0_19 = arith.constant 0 : index
    %c0_20 = arith.constant 0 : index
    %22 = vector.load %arg3[%c1_18, %c0_19, %c0_20] : memref<3x16x128xf32, #tpu.memory_space<vmem>>, vector<1x16x128xf32>
    %23 = vector.shape_cast %22 : vector<1x16x128xf32> to vector<16x128xf32>
    %24 = vector.extract_strided_slice %23 {offsets = [0, 0], sizes = [16, 72], strides = [1, 1]} : vector<16x128xf32> to vector<16x72xf32>
    %c0_21 = arith.constant 0 : index
    %c0_22 = arith.constant 0 : index
    %c0_23 = arith.constant 0 : index
    %25 = vector.load %arg4[%c0_21, %c0_22, %c0_23] : memref<2x72x256xf32, #tpu.memory_space<vmem>>, vector<1x72x256xf32>
    %26 = vector.shape_cast %25 : vector<1x72x256xf32> to vector<72x256xf32>
    %c1_24 = arith.constant 1 : index
    %c0_25 = arith.constant 0 : index
    %c0_26 = arith.constant 0 : index
    %27 = vector.load %arg4[%c1_24, %c0_25, %c0_26] : memref<2x72x256xf32, #tpu.memory_space<vmem>>, vector<1x72x256xf32>
    %28 = vector.shape_cast %27 : vector<1x72x256xf32> to vector<72x256xf32>
    %29 = vector.extract_strided_slice %28 {offsets = [0, 0], sizes = [72, 128], strides = [1, 1]} : vector<72x256xf32> to vector<72x128xf32>
    %c2_27 = arith.constant 2 : index
    %c0_28 = arith.constant 0 : index
    %c0_29 = arith.constant 0 : index
    %30 = vector.load %arg3[%c2_27, %c0_28, %c0_29] : memref<3x16x128xf32, #tpu.memory_space<vmem>>, vector<1x16x128xf32>
    %31 = vector.shape_cast %30 : vector<1x16x128xf32> to vector<16x128xf32>
    %32 = vector.extract_strided_slice %31 {offsets = [0, 0], sizes = [16, 8], strides = [1, 1]} : vector<16x128xf32> to vector<16x8xf32>
    %cst = arith.constant dense<0.000000e+00> : vector<16x256xf32>
    %33 = tpu.matmul %32, %1, %cst {dimension_numbers = #tpu.dot_dimension_numbers<[1], [0], [0], [1], [0, 0, 1, 1], [], []>} : vector<16x8xf32>, vector<8x256xf32>, vector<16x256xf32> -> vector<16x256xf32>
    %cst_30 = arith.constant dense<0.000000e+00> : vector<8xf32>
    %34 = vector.multi_reduction <add>, %1, %cst_30 [1] : vector<8x256xf32> to vector<8xf32>
    %35 = vector.shape_cast %34 : vector<8xf32> to vector<8x1xf32>
    %36 = arith.mulf %1, %1 : vector<8x256xf32>
    %cst_31 = arith.constant dense<0.000000e+00> : vector<8xf32>
    %37 = vector.multi_reduction <add>, %36, %cst_31 [1] : vector<8x256xf32> to vector<8xf32>
    %38 = vector.shape_cast %37 : vector<8xf32> to vector<8x1xf32>
    %cst_32 = arith.constant 3.906250e-03 : f32
    %39 = vector.broadcast %cst_32 : f32 to vector<8x1xf32>
    %40 = arith.mulf %35, %39 : vector<8x1xf32>
    %cst_33 = arith.constant 3.906250e-03 : f32
    %41 = vector.broadcast %cst_33 : f32 to vector<8x1xf32>
    %42 = arith.mulf %38, %41 : vector<8x1xf32>
    %43 = arith.mulf %40, %40 : vector<8x1xf32>
    %44 = arith.subf %42, %43 : vector<8x1xf32>
    %cst_34 = arith.constant 0.000000e+00 : f32
    %45 = vector.broadcast %cst_34 : f32 to vector<8x1xf32>
    %46 = arith.maximumf %44, %45 : vector<8x1xf32>
    %47 = vector.broadcast %40 : vector<8x1xf32> to vector<8x256xf32>
    %48 = arith.subf %1, %47 : vector<8x256xf32>
    %cst_35 = arith.constant 9.99999974E-6 : f32
    %49 = vector.broadcast %cst_35 : f32 to vector<8x1xf32>
    %50 = arith.addf %46, %49 : vector<8x1xf32>
    %51 = math.rsqrt %50 : vector<8x1xf32>
    %52 = vector.broadcast %51 : vector<8x1xf32> to vector<8x256xf32>
    %53 = arith.mulf %48, %52 : vector<8x256xf32>
    %54 = vector.broadcast %9 : vector<8x1xf32> to vector<8x256xf32>
    %55 = arith.mulf %53, %54 : vector<8x256xf32>
    %56 = vector.broadcast %12 : vector<8x1xf32> to vector<8x256xf32>
    %57 = arith.addf %55, %56 : vector<8x256xf32>
    %cst_36 = arith.constant 0.000000e+00 : f32
    %58 = vector.broadcast %cst_36 : f32 to vector<8x256xf32>
    %59 = arith.cmpf oge, %57, %58 : vector<8x256xf32>
    %cst_37 = arith.constant 2.000000e-01 : f32
    %60 = vector.broadcast %cst_37 : f32 to vector<8x256xf32>
    %61 = arith.mulf %60, %57 : vector<8x256xf32>
    %62 = arith.select %59, %57, %61 : vector<8x256xi1>, vector<8x256xf32>
    %c16_i32 = arith.constant 16 : i32
    %63 = tpu.dynamic_rotate %62 by %c16_i32 dim 1 : vector<8x256xf32>, i32 -> vector<8x256xf32>
    %c240_i32 = arith.constant 240 : i32
    %64 = tpu.dynamic_rotate %62 by %c240_i32 dim 1 : vector<8x256xf32>, i32 -> vector<8x256xf32>
    %65 = tpu.concatenate %63, %62, %64 in 0 : vector<8x256xf32>, vector<8x256xf32>, vector<8x256xf32> -> vector<24x256xf32>
    %c1_i32 = arith.constant 1 : i32
    %66 = tpu.dynamic_rotate %65 by %c1_i32 dim 1 : vector<24x256xf32>, i32 -> vector<24x256xf32>
    %c255_i32 = arith.constant 255 : i32
    %67 = tpu.dynamic_rotate %65 by %c255_i32 dim 1 : vector<24x256xf32>, i32 -> vector<24x256xf32>
    %68 = tpu.concatenate %66, %65, %67 in 0 : vector<24x256xf32>, vector<24x256xf32>, vector<24x256xf32> -> vector<72x256xf32>
    %69 = arith.mulf %68, %26 : vector<72x256xf32>
    %cst_38 = arith.constant dense<0.000000e+00> : vector<8x256xf32>
    %70 = tpu.matmul %21, %69, %cst_38 {dimension_numbers = #tpu.dot_dimension_numbers<[1], [0], [0], [1], [0, 0, 1, 1], [], []>} : vector<8x72xf32>, vector<72x256xf32>, vector<8x256xf32> -> vector<8x256xf32>
    %71 = vector.broadcast %4 : vector<8x1xf32> to vector<8x256xf32>
    %72 = arith.addf %70, %71 : vector<8x256xf32>
    %73 = tpu.concatenate %33, %72 in 0 : vector<16x256xf32>, vector<8x256xf32> -> vector<24x256xf32>
    %c0_39 = arith.constant 0 : index
    %c0_40 = arith.constant 0 : index
    %74 = vector.load %arg5[%c0_39, %c0_40] : memref<256x128xf32, #tpu.memory_space<vmem>>, vector<256x128xf32>
    %cst_41 = arith.constant dense<0.000000e+00> : vector<24x128xf32>
    %75 = tpu.matmul %73, %74, %cst_41 {dimension_numbers = #tpu.dot_dimension_numbers<[1], [0], [0], [1], [0, 0, 1, 1], [], []>} : vector<24x256xf32>, vector<256x128xf32>, vector<24x128xf32> -> vector<24x128xf32>
    %76 = vector.extract_strided_slice %75 {offsets = [0, 0], sizes = [16, 128], strides = [1, 1]} : vector<24x128xf32> to vector<16x128xf32>
    %77 = vector.extract_strided_slice %75 {offsets = [16, 0], sizes = [8, 128], strides = [1, 1]} : vector<24x128xf32> to vector<8x128xf32>
    %cst_42 = arith.constant dense<0.000000e+00> : vector<8xf32>
    %78 = vector.multi_reduction <add>, %77, %cst_42 [1] : vector<8x128xf32> to vector<8xf32>
    %79 = vector.shape_cast %78 : vector<8xf32> to vector<8x1xf32>
    %80 = arith.mulf %77, %77 : vector<8x128xf32>
    %cst_43 = arith.constant dense<0.000000e+00> : vector<8xf32>
    %81 = vector.multi_reduction <add>, %80, %cst_43 [1] : vector<8x128xf32> to vector<8xf32>
    %82 = vector.shape_cast %81 : vector<8xf32> to vector<8x1xf32>
    %cst_44 = arith.constant 1.562500e-02 : f32
    %83 = vector.broadcast %cst_44 : f32 to vector<8x1xf32>
    %84 = arith.mulf %79, %83 : vector<8x1xf32>
    %cst_45 = arith.constant 1.562500e-02 : f32
    %85 = vector.broadcast %cst_45 : f32 to vector<8x1xf32>
    %86 = arith.mulf %82, %85 : vector<8x1xf32>
    %87 = arith.mulf %84, %84 : vector<8x1xf32>
    %88 = arith.subf %86, %87 : vector<8x1xf32>
    %cst_46 = arith.constant 0.000000e+00 : f32
    %89 = vector.broadcast %cst_46 : f32 to vector<8x1xf32>
    %90 = arith.maximumf %88, %89 : vector<8x1xf32>
    %91 = vector.broadcast %84 : vector<8x1xf32> to vector<8x128xf32>
    %92 = arith.subf %77, %91 : vector<8x128xf32>
    %cst_47 = arith.constant 9.99999974E-6 : f32
    %93 = vector.broadcast %cst_47 : f32 to vector<8x1xf32>
    %94 = arith.addf %90, %93 : vector<8x1xf32>
    %95 = math.rsqrt %94 : vector<8x1xf32>
    %96 = vector.broadcast %95 : vector<8x1xf32> to vector<8x128xf32>
    %97 = arith.mulf %92, %96 : vector<8x128xf32>
    %98 = vector.broadcast %15 : vector<8x1xf32> to vector<8x128xf32>
    %99 = arith.mulf %97, %98 : vector<8x128xf32>
    %100 = vector.broadcast %18 : vector<8x1xf32> to vector<8x128xf32>
    %101 = arith.addf %99, %100 : vector<8x128xf32>
    %cst_48 = arith.constant 0.000000e+00 : f32
    %102 = vector.broadcast %cst_48 : f32 to vector<8x128xf32>
    %103 = arith.cmpf oge, %101, %102 : vector<8x128xf32>
    %cst_49 = arith.constant 2.000000e-01 : f32
    %104 = vector.broadcast %cst_49 : f32 to vector<8x128xf32>
    %105 = arith.mulf %104, %101 : vector<8x128xf32>
    %106 = arith.select %103, %101, %105 : vector<8x128xi1>, vector<8x128xf32>
    %c8_i32 = arith.constant 8 : i32
    %107 = tpu.dynamic_rotate %106 by %c8_i32 dim 1 : vector<8x128xf32>, i32 -> vector<8x128xf32>
    %c120_i32 = arith.constant 120 : i32
    %108 = tpu.dynamic_rotate %106 by %c120_i32 dim 1 : vector<8x128xf32>, i32 -> vector<8x128xf32>
    %109 = tpu.concatenate %107, %106, %108 in 0 : vector<8x128xf32>, vector<8x128xf32>, vector<8x128xf32> -> vector<24x128xf32>
    %c1_i32_50 = arith.constant 1 : i32
    %110 = tpu.dynamic_rotate %109 by %c1_i32_50 dim 1 : vector<24x128xf32>, i32 -> vector<24x128xf32>
    %c127_i32 = arith.constant 127 : i32
    %111 = tpu.dynamic_rotate %109 by %c127_i32 dim 1 : vector<24x128xf32>, i32 -> vector<24x128xf32>
    %112 = tpu.concatenate %110, %109, %111 in 0 : vector<24x128xf32>, vector<24x128xf32>, vector<24x128xf32> -> vector<72x128xf32>
    %113 = arith.mulf %112, %29 : vector<72x128xf32>
    %cst_51 = arith.constant dense<0.000000e+00> : vector<16x128xf32>
    %114 = tpu.matmul %24, %113, %cst_51 {dimension_numbers = #tpu.dot_dimension_numbers<[1], [0], [0], [1], [0, 0, 1, 1], [], []>} : vector<16x72xf32>, vector<72x128xf32>, vector<16x128xf32> -> vector<16x128xf32>
    %115 = vector.broadcast %6 : vector<16x1xf32> to vector<16x128xf32>
    %116 = arith.addf %114, %115 : vector<16x128xf32>
    %117 = arith.addf %76, %116 : vector<16x128xf32>
    %cst_52 = arith.constant 0.707106769 : f32
    %118 = vector.broadcast %cst_52 : f32 to vector<16x128xf32>
    %119 = arith.mulf %117, %118 : vector<16x128xf32>
    %c0_53 = arith.constant 0 : index
    %c0_54 = arith.constant 0 : index
    %c0_55 = arith.constant 0 : index
    %120 = vector.load %arg6[%c0_53, %c0_54, %c0_55] : memref<1x16x128xf32, #tpu.memory_space<vmem>>, vector<1x16x128xf32>
    %121 = vector.shape_cast %120 : vector<1x16x128xf32> to vector<16x128xf32>
    %122 = vector.shape_cast %119 : vector<16x128xf32> to vector<1x16x128xf32>
    tpu.vector_store %arg6[%c0_53, %c0_54, %c0_55], %122 {strides = array<i32>} : memref<1x16x128xf32, #tpu.memory_space<vmem>>, vector<1x16x128xf32>,
    return
  }
  func.func @transform_0(%arg0: i32) -> (i32, i32, i32) {
    %c0_i32 = arith.constant 0 : i32
    %c0_i32_0 = arith.constant 0 : i32
    %c0_i32_1 = arith.constant 0 : i32
    return %arg0, %c0_i32, %c0_i32_0 : i32, i32, i32
  }
  func.func @transform_1(%arg0: i32) -> (i32, i32, i32) {
    %c0_i32 = arith.constant 0 : i32
    %c0_i32_0 = arith.constant 0 : i32
    %c0_i32_1 = arith.constant 0 : i32
    %c0_i32_2 = arith.constant 0 : i32
    return %c0_i32, %c0_i32_0, %c0_i32_1 : i32, i32, i32
  }
  func.func @transform_2(%arg0: i32) -> (i32, i32, i32) {
    %c0_i32 = arith.constant 0 : i32
    %c0_i32_0 = arith.constant 0 : i32
    %c0_i32_1 = arith.constant 0 : i32
    %c0_i32_2 = arith.constant 0 : i32
    return %c0_i32, %c0_i32_0, %c0_i32_1 : i32, i32, i32
  }
  func.func @transform_3(%arg0: i32) -> (i32, i32, i32) {
    %c0_i32 = arith.constant 0 : i32
    %c0_i32_0 = arith.constant 0 : i32
    %c0_i32_1 = arith.constant 0 : i32
    %c0_i32_2 = arith.constant 0 : i32
    return %c0_i32, %c0_i32_0, %c0_i32_1 : i32, i32, i32
  }
  func.func @transform_4(%arg0: i32) -> (i32, i32) {
    %c0_i32 = arith.constant 0 : i32
    %c0_i32_0 = arith.constant 0 : i32
    %c0_i32_1 = arith.constant 0 : i32
    return %c0_i32, %c0_i32_0 : i32, i32
  }
  func.func @transform_5(%arg0: i32) -> (i32, i32, i32) {
    %c0_i32 = arith.constant 0 : i32
    %c0_i32_0 = arith.constant 0 : i32
    %c0_i32_1 = arith.constant 0 : i32
    return %arg0, %c0_i32, %c0_i32_0 : i32, i32, i32
  }
}

</mosaic_0001>

<llo_original>
// kernel: tpu_custom_call.1
$region0: #{tpu_custom_call.1}
  #allocation0 [shape = 'u32[]', space=smem, size = 0x4, offset = 0x4, fixed_abs, tag = 'smem constant byte address 0x4 - core index']
  #allocation1 [shape = 'u32[144,128]{1,0:T(1,128)}', space=vmem, size = 0x12000, scoped, tag = 'internal scratch']
  %s0 = inlined_call_operand.vmem [shape: f32[1,8,256], index: 0, kind: input, shape index: {}]
  %s1 = inlined_call_operand.vmem [shape: f32[6,16,1], index: 1, kind: input, shape index: {}]
  %s2 = inlined_call_operand.vmem [shape: f32[3,16,128], index: 2, kind: input, shape index: {}]
  %s3 = inlined_call_operand.hbm [shape: f32[2,72,256], index: 3, kind: input, shape index: {}]
  %s4 = inlined_call_operand.hbm [shape: f32[256,128], index: 4, kind: input, shape index: {}]
  %s5 = inlined_call_operand.hbm [shape: f32[1,16,128], index: 5, kind: output, shape index: {}]
  %s6 = sld [smem:[#allocation0]]
  $region38: #{tpu_custom_call.1} parent=0
    _
  %s8 = ssub.s32 1, %s6
  %s9 = scalar_select 0, %s8, %s6
  $region1: #{tpu_custom_call.1} parent=0
    #allocation2 [shape = 'u8[147456]{0}', space=vmem, size = 0x24000, scoped, tag = 'input window, operand 3, single buffered']
    #allocation3 [shape = 's32[1]{0}', space=sflag, size = 0x4, scoped, tag = 'scoped memory for tpu_custom_call.1']
    #allocation4 [shape = 's32[1]{0}', space=sflag, size = 0x4, scoped, tag = 'scoped memory for tpu_custom_call.1']
    #allocation5 [shape = 'u8[131072]{0}', space=vmem, size = 0x20000, scoped, tag = 'input window, operand 4, single buffered']
    #allocation6 [shape = 's32[1]{0}', space=sflag, size = 0x4, scoped, tag = 'scoped memory for tpu_custom_call.1']
    #allocation7 [shape = 'u8[8192]{0}', space=vmem, size = 0x2000, scoped, tag = 'output window, operand 0, single buffered']
    %10 = vsyncpa [#allocation3], 0
    %11 = vsyncpa [#allocation6], 0
    %12 = vsyncpa [#allocation4], 0
    // Predicated region
    $region2: #{tpu_custom_call.1} parent=1 // pred_check
      _
    $region3: #{tpu_custom_call.1} parent=1 // pred_check_branch
      %14 = sbr.rel (0) target = $region5
    $region4: #{tpu_custom_call.1} parent=1 // pred_region
      _
    $region5: #{tpu_custom_call.1} parent=1 // pred_fallthru
      _
    // Predicated region
    $region6: #{tpu_custom_call.1} parent=1 // pred_check
      _
    $region7: #{tpu_custom_call.1} parent=1 // pred_check_branch
      %16 = sbr.rel (0) target = $region9
    $region8: #{tpu_custom_call.1} parent=1 // pred_region
      _
    $region9: #{tpu_custom_call.1} parent=1 // pred_fallthru
      _
    // Predicated region
    $region10: #{tpu_custom_call.1} parent=1 // pred_check
      _
    $region11: #{tpu_custom_call.1} parent=1 // pred_check_branch
      %18 = sbr.rel (0) target = $region13
    $region12: #{tpu_custom_call.1} parent=1 // pred_region
      _
    $region13: #{tpu_custom_call.1} parent=1 // pred_fallthru
      _
    // Predicated region
    $region14: #{tpu_custom_call.1} parent=1 // pred_check
      _
    $region15: #{tpu_custom_call.1} parent=1 // pred_check_branch
      %20 = sbr.rel (0) target = $region17
    $region16: #{tpu_custom_call.1} parent=1 // pred_region
      %s22 = ssub.s32 4608, 4608
      %23 = vsyncadd [#allocation3], %s22
      %s24 = sshll.u32 [#allocation2], 4
      %s25 = int_to_ptr.vmem [resolvable:$true] %s24
      %30 = dma.hbm_to_vmem [thread:$0]  %s3, 4608, %s25, [#allocation3], 256, 256, 16
    $region17: #{tpu_custom_call.1} parent=1 // pred_fallthru
      _
    // Predicated region
    $region18: #{tpu_custom_call.1} parent=1 // pred_check
      _
    $region19: #{tpu_custom_call.1} parent=1 // pred_check_branch
      %32 = sbr.rel (0) target = $region21
    $region20: #{tpu_custom_call.1} parent=1 // pred_region
      %s34 = ssub.s32 4096, 4096
      %35 = vsyncadd [#allocation6], %s34
      %s36 = sshll.u32 [#allocation5], 4
      %s37 = int_to_ptr.vmem [resolvable:$true] %s36
      %42 = dma.hbm_to_vmem [thread:$0]  %s4, 4096, %s37, [#allocation6], 128, 128, 8
    $region21: #{tpu_custom_call.1} parent=1 // pred_fallthru
      _
    // Predicated region
    $region22: #{tpu_custom_call.1} parent=1 // pred_check
      _
    $region23: #{tpu_custom_call.1} parent=1 // pred_check_branch
      %44 = sbr.rel (0) target = $region25
    $region24: #{tpu_custom_call.1} parent=1 // pred_region
      %45 = dma.done [#allocation3], 4608
    $region25: #{tpu_custom_call.1} parent=1 // pred_fallthru
      _
    // Predicated region
    $region26: #{tpu_custom_call.1} parent=1 // pred_check
      _
    $region27: #{tpu_custom_call.1} parent=1 // pred_check_branch
      %47 = sbr.rel (0) target = $region29
    $region28: #{tpu_custom_call.1} parent=1 // pred_region
      %48 = dma.done [#allocation6], 4096
    $region29: #{tpu_custom_call.1} parent=1 // pred_fallthru
      _
    %v49 = vld [vmem:[%s0] sm:$0xff]
    %v50 = vld [vmem:[%s0 + $0x8] sm:$0xff]
    %s51 = scalar_lea.vmem %s1, 64
    %v52 = vld [vmem:[%s51] sm:$0xff]
    %s53 = scalar_lea.vmem %s1, 80
    %v54 = vld [vmem:[%s53] sm:$0xff]
    %v55 = vld [vmem:[%s53 + $0x8] sm:$0xff]
    %v56 = vld [vmem:[%s1] sm:$0xff]
    %s57 = scalar_lea.vmem %s1, 16
    %v58 = vld [vmem:[%s57] sm:$0xff]
    %s59 = scalar_lea.vmem %s1, 32
    %v60 = vld [vmem:[%s59] sm:$0xff]
    %s61 = scalar_lea.vmem %s1, 48
    %v62 = vld [vmem:[%s61] sm:$0xff]
    %v63 = vld [vmem:[%s2] sm:$0xff]
    %s64 = scalar_lea.vmem %s2, 16
    %v65 = vld [vmem:[%s64] sm:$0xff]
    %v66 = vld [vmem:[%s64 + $0x8] sm:$0xff]
    %v67 = vld [vmem:[#allocation2] sm:$0xff]
    %v68 = vld [vmem:[#allocation2 + $0x8] sm:$0xff]
    %v69 = vld [vmem:[#allocation2 + $0x10] sm:$0xff]
    %v70 = vld [vmem:[#allocation2 + $0x18] sm:$0xff]
    %v71 = vld [vmem:[#allocation2 + $0x20] sm:$0xff]
    %v72 = vld [vmem:[#allocation2 + $0x28] sm:$0xff]
    %v73 = vld [vmem:[#allocation2 + $0x30] sm:$0xff]
    %v74 = vld [vmem:[#allocation2 + $0x38] sm:$0xff]
    %v75 = vld [vmem:[#allocation2 + $0x40] sm:$0xff]
    %v76 = vld [vmem:[#allocation2 + $0x48] sm:$0xff]
    %v77 = vld [vmem:[#allocation2 + $0x50] sm:$0xff]
    %v78 = vld [vmem:[#allocation2 + $0x58] sm:$0xff]
    %v79 = vld [vmem:[#allocation2 + $0x60] sm:$0xff]
    %v80 = vld [vmem:[#allocation2 + $0x68] sm:$0xff]
    %v81 = vld [vmem:[#allocation2 + $0x70] sm:$0xff]
    %v82 = vld [vmem:[#allocation2 + $0x78] sm:$0xff]
    %v83 = vld [vmem:[#allocation2 + $0x80] sm:$0xff]
    %v84 = vld [vmem:[#allocation2 + $0x88] sm:$0xff]
    %s85 = scalar_lea.vmem [#allocation2], 144
    %v86 = vld [vmem:[%s85] sm:$0xff]
    %v87 = vld [vmem:[%s85 + $0x10] sm:$0xff]
    %v88 = vld [vmem:[%s85 + $0x20] sm:$0xff]
    %v89 = vld [vmem:[%s85 + $0x30] sm:$0xff]
    %v90 = vld [vmem:[%s85 + $0x40] sm:$0xff]
    %v91 = vld [vmem:[%s85 + $0x50] sm:$0xff]
    %v92 = vld [vmem:[%s85 + $0x60] sm:$0xff]
    %v93 = vld [vmem:[%s85 + $0x70] sm:$0xff]
    %v94 = vld [vmem:[%s85 + $0x80] sm:$0xff]
    %s95 = scalar_lea.vmem %s2, 32
    %v96 = vld [vmem:[%s95] sm:$0xff]
    %v97 = vld [vmem:[%s95 + $0x8] sm:$0xff]
    %vm98 = vcmask 64512
    %v100 = vsel %vm98, %v96, 0
    %v103 = vsel %vm98, %v97, 0
    %105 = vmatprep.subr.mxu0 %v50
    %106 = vmatpush1.msra.mxu0 %v49
    %107 = vmatprep.subr.mxu0 0.0
    %108 = vmatpush1.msra.mxu0 0.0
    %109 = vmatprep.subr.mxu0 0.0
    %110 = vmatpush1.msra.mxu0 0.0
    %111 = vmatprep.subr.mxu0 0.0
    %112 = vmatpush1.msra.mxu0 0.0
    %113 = vmatprep.subr.mxu0 0.0
    %114 = vmatpush1.msra.mxu0 0.0
    %115 = vmatprep.subr.mxu0 0.0
    %116 = vmatpush1.msra.mxu0 0.0
    %117 = vmatprep.subr.mxu0 0.0
    %118 = vmatpush1.msra.mxu0 0.0
    %119 = vmatprep.subr.mxu0 0.0
    %120 = vmatpush1.msra.mxu0 0.0
    %121 = vmatprep.subr.mxu0 0.0
    %122 = vmatpush1.msra.mxu0 0.0
    %123 = vmatprep.subr.mxu0 0.0
    %124 = vmatpush1.msra.mxu0 0.0
    %125 = vmatprep.subr.mxu0 0.0
    %126 = vmatpush1.msra.mxu0 0.0
    %127 = vmatprep.subr.mxu0 0.0
    %128 = vmatpush1.msra.mxu0 0.0
    %129 = vmatprep.subr.mxu0 0.0
    %130 = vmatpush1.msra.mxu0 0.0
    %131 = vmatprep.subr.mxu0 0.0
    %132 = vmatpush1.msra.mxu0 0.0
    %133 = vmatprep.subr.mxu0 0.0
    %134 = vmatpush1.msra.mxu0 0.0
    %135 = vmatprep.subr.mxu0 0.0
    %136 = vmatpush1.msra.mxu0 0.0
    %137 = vmatprep.subr.mxu0 0.0
    %138 = vmatpush1.msra.mxu0 0.0
    %139 = vmatprep.subr.mxu0 0.0
    %140 = vmatpush1.msra.mxu0 0.0
    %141 = vmatprep.subr.mxu0 0.0
    %142 = vmatpush1.msra.mxu0 0.0
    %143 = vmatprep.subr.mxu0 0.0
    %144 = vmatpush1.msra.mxu0 0.0
    %145 = vmatprep.subr.mxu0 0.0
    %146 = vmatpush1.msra.mxu0 0.0
    %147 = vmatprep.subr.mxu0 0.0
    %148 = vmatpush1.msra.mxu0 0.0
    %149 = vmatprep.subr.mxu0 0.0
    %150 = vmatpush1.msra.mxu0 0.0
    %151 = vmatprep.subr.mxu0 0.0
    %152 = vmatpush1.msra.mxu0 0.0
    %153 = vmatprep.subr.mxu0 0.0
    %154 = vmatpush1.msra.mxu0 0.0
    %155 = vmatprep.subr.mxu0 0.0
    %156 = vmatpush1.msra.mxu0 0.0
    %157 = vmatprep.subr.mxu0 0.0
    %158 = vmatpush1.msra.mxu0 0.0
    %159 = vmatprep.subr.mxu0 0.0
    %160 = vmatpush1.msra.mxu0 0.0
    %161 = vmatprep.subr.mxu0 0.0
    %162 = vmatpush1.msra.mxu0 0.0
    %163 = vmatprep.subr.mxu0 0.0
    %164 = vmatpush1.msra.mxu0 0.0
    %165 = vmatprep.subr.mxu0 0.0
    %166 = vmatpush1.msra.mxu0 0.0
    %167 = vmatprep.subr.mxu0 0.0
    %168 = vmatpush1.msra.mxu0 0.0
    %169 = vmatprep.mubr.f32.mxu0 0.0
    %170 = vmatmul.mubr.f32.gmra.mrb[0].mxu0 %v100
    %v171 = vpop.f32.mrb[0].mxu0
    %v172 = vadd.f32 0.0, %v171
    %v173 = vpop.f32.mrb[0].mxu0
    %v174 = vadd.f32 0.0, %v173
    %175 = vmatprep.mubr.f32.mxu0 0.0
    %176 = vmatmul.mubr.f32.gmra.mrb[0].mxu0 %v103
    %v177 = vpop.f32.mrb[0].mxu0
    %v178 = vadd.f32 0.0, %v177
    %v179 = vpop.f32.mrb[0].mxu0
    %v180 = vadd.f32 0.0, %v179
    %181 = vdwg.mxu0
    %v182 = vadd.f32 %v49, %v50
    %183 = vadd.xlane.f32.xlu0 %v182
    %v184 = vpop.xlane.xlu0 %183
    %v185 = vmul.f32 %v49, %v49
    %v186 = vmul.f32 %v50, %v50
    %v187 = vadd.f32 %v185, %v186
    %188 = vadd.xlane.f32.xlu0 %v187
    %v189 = vpop.xlane.xlu0 %188
    %v190 = vmul.f32 %v184, 0.00390625
    %v191 = vmul.f32 %v189, 0.00390625
    %v192 = vmul.f32 %v190, %v190
    %v193 = vsub.f32 %v191, %v192
    %v194 = vmax.f32 %v193, 0.0
    %v195 = vsub.f32 %v49, %v190
    %v196 = vsub.f32 %v50, %v190
    %v197 = vadd.f32 %v194, 1e-05
    %v198 = vrsqrt.pop %v197
    %v199 = vmul.f32 %v195, %v198
    %v200 = vmul.f32 %v196, %v198
    %202 = vset.pattern.permute.xlu0 0
    %203 = vperm.xlu0 %202, %v56
    %v204 = vpop.permute.xlu0 %203
    %v206 = vmul.f32 %v199, %v204
    %v207 = vmul.f32 %v200, %v204
    %209 = vset.pattern.permute.xlu0 0
    %210 = vperm.xlu0 %209, %v58
    %v211 = vpop.permute.xlu0 %210
    %v213 = vadd.f32 %v206, %v211
    %v214 = vadd.f32 %v207, %v211
    %vm215 = vcmp.ge.f32.partialorder %v213, 0.0
    %vm216 = vcmp.ge.f32.partialorder %v214, 0.0
    %v217 = vmul.f32 %v213, 0.2
    %v218 = vmul.f32 %v214, 0.2
    %v219 = vsel %vm215, %v213, %v217
    %v220 = vsel %vm216, %v214, %v218
    %221 = vrot.lane.b32.xlu0 %v219, 16
    %v222 = vpop.permute.xlu0 %221
    %223 = vrot.lane.b32.xlu0 %v220, 16
    %v224 = vpop.permute.xlu0 %223
    %v225 = vlaneseq
    %v226 = vand.u32 %v225, 127
    %vm227 = vcmp.lt.s32.totalorder %v226, 16
    %v228 = vsel %vm227, %v222, %v224
    %v229 = vsel %vm227, %v224, %v222
    %230 = vrot.lane.b32.xlu0 %v219, 112
    %v231 = vpop.permute.xlu0 %230
    %232 = vrot.lane.b32.xlu0 %v220, 112
    %v233 = vpop.permute.xlu0 %232
    %vm234 = vcmp.lt.s32.totalorder %v226, 112
    %v235 = vsel %vm234, %v231, %v233
    %v236 = vsel %vm234, %v233, %v231
    %237 = vrot.lane.b32.xlu0 %v229, 1
    %v238 = vpop.permute.xlu0 %237
    %239 = vrot.lane.b32.xlu0 %v219, 1
    %v240 = vpop.permute.xlu0 %239
    %241 = vrot.lane.b32.xlu0 %v235, 1
    %v242 = vpop.permute.xlu0 %241
    %243 = vrot.lane.b32.xlu0 %v228, 1
    %v244 = vpop.permute.xlu0 %243
    %245 = vrot.lane.b32.xlu0 %v220, 1
    %v246 = vpop.permute.xlu0 %245
    %247 = vrot.lane.b32.xlu0 %v236, 1
    %v248 = vpop.permute.xlu0 %247
    %vm249 = vcmp.lt.s32.totalorder %v226, 1
    %v250 = vsel %vm249, %v238, %v244
    %v251 = vsel %vm249, %v240, %v246
    %v252 = vsel %vm249, %v242, %v248
    %v253 = vsel %vm249, %v244, %v238
    %v254 = vsel %vm249, %v246, %v240
    %v255 = vsel %vm249, %v248, %v242
    %256 = vrot.lane.b32.xlu0 %v229, 127
    %v257 = vpop.permute.xlu0 %256
    %258 = vrot.lane.b32.xlu0 %v219, 127
    %v259 = vpop.permute.xlu0 %258
    %260 = vrot.lane.b32.xlu0 %v235, 127
    %v261 = vpop.permute.xlu0 %260
    %262 = vrot.lane.b32.xlu0 %v228, 127
    %v263 = vpop.permute.xlu0 %262
    %264 = vrot.lane.b32.xlu0 %v220, 127
    %v265 = vpop.permute.xlu0 %264
    %266 = vrot.lane.b32.xlu0 %v236, 127
    %v267 = vpop.permute.xlu0 %266
    %vm268 = vcmp.lt.s32.totalorder %v226, 127
    %v269 = vsel %vm268, %v257, %v263
    %v270 = vsel %vm268, %v259, %v265
    %v271 = vsel %vm268, %v261, %v267
    %v272 = vsel %vm268, %v263, %v257
    %v273 = vsel %vm268, %v265, %v259
    %v274 = vsel %vm268, %v267, %v261
    %v275 = vmul.f32 %v253, %v67
    %v276 = vmul.f32 %v250, %v68
    %v277 = vmul.f32 %v254, %v69
    %v278 = vmul.f32 %v251, %v70
    %v279 = vmul.f32 %v255, %v71
    %v280 = vmul.f32 %v252, %v72
    %v281 = vmul.f32 %v229, %v73
    %v282 = vmul.f32 %v228, %v74
    %v283 = vmul.f32 %v219, %v75
    %v284 = vmul.f32 %v220, %v76
    %v285 = vmul.f32 %v235, %v77
    %v286 = vmul.f32 %v236, %v78
    %v287 = vmul.f32 %v269, %v79
    %v288 = vmul.f32 %v272, %v80
    %v289 = vmul.f32 %v270, %v81
    %v290 = vmul.f32 %v273, %v82
    %v291 = vmul.f32 %v271, %v83
    %v292 = vmul.f32 %v274, %v84
    %294 = vset.pattern.permute.xlu0 0
    %295 = vperm.xlu0 %294, %v52
    %v296 = vpop.permute.xlu0 %295
    %vm298 = vcmask 588800
    %v300 = vsel %vm298, %v63, 0
    %302 = vmatprep.subr.mxu0 %v276
    %303 = vmatpush1.msra.mxu0 %v275
    %304 = vmatprep.subr.mxu0 %v278
    %305 = vmatpush1.msra.mxu0 %v277
    %306 = vmatprep.subr.mxu0 %v280
    %307 = vmatpush1.msra.mxu0 %v279
    %308 = vmatprep.subr.mxu0 %v282
    %309 = vmatpush1.msra.mxu0 %v281
    %310 = vmatprep.subr.mxu0 %v284
    %311 = vmatpush1.msra.mxu0 %v283
    %312 = vmatprep.subr.mxu0 %v286
    %313 = vmatpush1.msra.mxu0 %v285
    %314 = vmatprep.subr.mxu0 %v288
    %315 = vmatpush1.msra.mxu0 %v287
    %316 = vmatprep.subr.mxu0 %v290
    %317 = vmatpush1.msra.mxu0 %v289
    %318 = vmatprep.subr.mxu0 %v292
    %319 = vmatpush1.msra.mxu0 %v291
    %320 = vmatprep.subr.mxu0 0.0
    %321 = vmatpush1.msra.mxu0 0.0
    %322 = vmatprep.subr.mxu0 0.0
    %323 = vmatpush1.msra.mxu0 0.0
    %324 = vmatprep.subr.mxu0 0.0
    %325 = vmatpush1.msra.mxu0 0.0
    %326 = vmatprep.subr.mxu0 0.0
    %327 = vmatpush1.msra.mxu0 0.0
    %328 = vmatprep.subr.mxu0 0.0
    %329 = vmatpush1.msra.mxu0 0.0
    %330 = vmatprep.subr.mxu0 0.0
    %331 = vmatpush1.msra.mxu0 0.0
    %332 = vmatprep.subr.mxu0 0.0
    %333 = vmatpush1.msra.mxu0 0.0
    %334 = vmatprep.subr.mxu0 0.0
    %335 = vmatpush1.msra.mxu0 0.0
    %336 = vmatprep.subr.mxu0 0.0
    %337 = vmatpush1.msra.mxu0 0.0
    %338 = vmatprep.subr.mxu0 0.0
    %339 = vmatpush1.msra.mxu0 0.0
    %340 = vmatprep.subr.mxu0 0.0
    %341 = vmatpush1.msra.mxu0 0.0
    %342 = vmatprep.subr.mxu0 0.0
    %343 = vmatpush1.msra.mxu0 0.0
    %344 = vmatprep.subr.mxu0 0.0
    %345 = vmatpush1.msra.mxu0 0.0
    %346 = vmatprep.subr.mxu0 0.0
    %347 = vmatpush1.msra.mxu0 0.0
    %348 = vmatprep.subr.mxu0 0.0
    %349 = vmatpush1.msra.mxu0 0.0
    %350 = vmatprep.subr.mxu0 0.0
    %351 = vmatpush1.msra.mxu0 0.0
    %352 = vmatprep.subr.mxu0 0.0
    %353 = vmatpush1.msra.mxu0 0.0
    %354 = vmatprep.subr.mxu0 0.0
    %355 = vmatpush1.msra.mxu0 0.0
    %356 = vmatprep.subr.mxu0 0.0
    %357 = vmatpush1.msra.mxu0 0.0
    %358 = vmatprep.subr.mxu0 0.0
    %359 = vmatpush1.msra.mxu0 0.0
    %360 = vmatprep.subr.mxu0 0.0
    %361 = vmatpush1.msra.mxu0 0.0
    %362 = vmatprep.subr.mxu0 0.0
    %363 = vmatpush1.msra.mxu0 0.0
    %364 = vmatprep.subr.mxu0 0.0
    %365 = vmatpush1.msra.mxu0 0.0
    %366 = vmatprep.mubr.f32.mxu0 0.0
    %367 = vmatmul.mubr.f32.gmra.mrb[0].mxu0 %v300
    %v368 = vpop.f32.mrb[0].mxu0
    %v369 = vadd.f32 %v296, %v368
    %v370 = vpop.f32.mrb[0].mxu0
    %v371 = vadd.f32 %v296, %v370
    %372 = vdwg.mxu0
    %v373 = vld [vmem:[#allocation5] sm:$0xff]
    %v374 = vld [vmem:[#allocation5 + $0x8] sm:$0xff]
    %v375 = vld [vmem:[#allocation5 + $0x10] sm:$0xff]
    %v376 = vld [vmem:[#allocation5 + $0x18] sm:$0xff]
    %v377 = vld [vmem:[#allocation5 + $0x20] sm:$0xff]
    %v378 = vld [vmem:[#allocation5 + $0x28] sm:$0xff]
    %v379 = vld [vmem:[#allocation5 + $0x30] sm:$0xff]
    %v380 = vld [vmem:[#allocation5 + $0x38] sm:$0xff]
    %v381 = vld [vmem:[#allocation5 + $0x40] sm:$0xff]
    %v382 = vld [vmem:[#allocation5 + $0x48] sm:$0xff]
    %v383 = vld [vmem:[#allocation5 + $0x50] sm:$0xff]
    %v384 = vld [vmem:[#allocation5 + $0x58] sm:$0xff]
    %v385 = vld [vmem:[#allocation5 + $0x60] sm:$0xff]
    %v386 = vld [vmem:[#allocation5 + $0x68] sm:$0xff]
    %v387 = vld [vmem:[#allocation5 + $0x70] sm:$0xff]
    %v388 = vld [vmem:[#allocation5 + $0x78] sm:$0xff]
    %v389 = vld [vmem:[#allocation5 + $0x80] sm:$0xff]
    %v390 = vld [vmem:[#allocation5 + $0x88] sm:$0xff]
    %v391 = vld [vmem:[#allocation5 + $0x90] sm:$0xff]
    %v392 = vld [vmem:[#allocation5 + $0x98] sm:$0xff]
    %v393 = vld [vmem:[#allocation5 + $0xa0] sm:$0xff]
    %v394 = vld [vmem:[#allocation5 + $0xa8] sm:$0xff]
    %v395 = vld [vmem:[#allocation5 + $0xb0] sm:$0xff]
    %v396 = vld [vmem:[#allocation5 + $0xb8] sm:$0xff]
    %v397 = vld [vmem:[#allocation5 + $0xc0] sm:$0xff]
    %v398 = vld [vmem:[#allocation5 + $0xc8] sm:$0xff]
    %v399 = vld [vmem:[#allocation5 + $0xd0] sm:$0xff]
    %v400 = vld [vmem:[#allocation5 + $0xd8] sm:$0xff]
    %v401 = vld [vmem:[#allocation5 + $0xe0] sm:$0xff]
    %v402 = vld [vmem:[#allocation5 + $0xe8] sm:$0xff]
    %v403 = vld [vmem:[#allocation5 + $0xf0] sm:$0xff]
    %v404 = vld [vmem:[#allocation5 + $0xf8] sm:$0xff]
    %405 = vmatprep.subr.mxu0 0.0
    %406 = vmatpush1.msra.mxu0 %v373
    %407 = vmatprep.subr.mxu0 0.0
    %408 = vmatpush1.msra.mxu0 %v374
    %409 = vmatprep.subr.mxu0 0.0
    %410 = vmatpush1.msra.mxu0 %v375
    %411 = vmatprep.subr.mxu0 0.0
    %412 = vmatpush1.msra.mxu0 %v376
    %413 = vmatprep.subr.mxu0 0.0
    %414 = vmatpush1.msra.mxu0 %v377
    %415 = vmatprep.subr.mxu0 0.0
    %416 = vmatpush1.msra.mxu0 %v378
    %417 = vmatprep.subr.mxu0 0.0
    %418 = vmatpush1.msra.mxu0 %v379
    %419 = vmatprep.subr.mxu0 0.0
    %420 = vmatpush1.msra.mxu0 %v380
    %421 = vmatprep.subr.mxu0 0.0
    %422 = vmatpush1.msra.mxu0 %v381
    %423 = vmatprep.subr.mxu0 0.0
    %424 = vmatpush1.msra.mxu0 %v382
    %425 = vmatprep.subr.mxu0 0.0
    %426 = vmatpush1.msra.mxu0 %v383
    %427 = vmatprep.subr.mxu0 0.0
    %428 = vmatpush1.msra.mxu0 %v384
    %429 = vmatprep.subr.mxu0 0.0
    %430 = vmatpush1.msra.mxu0 %v385
    %431 = vmatprep.subr.mxu0 0.0
    %432 = vmatpush1.msra.mxu0 %v386
    %433 = vmatprep.subr.mxu0 0.0
    %434 = vmatpush1.msra.mxu0 %v387
    %435 = vmatprep.subr.mxu0 0.0
    %436 = vmatpush1.msra.mxu0 %v388
    %437 = vmatprep.subr.mxu0 0.0
    %438 = vmatpush1.msra.mxu0 %v389
    %439 = vmatprep.subr.mxu0 0.0
    %440 = vmatpush1.msra.mxu0 %v390
    %441 = vmatprep.subr.mxu0 0.0
    %442 = vmatpush1.msra.mxu0 %v391
    %443 = vmatprep.subr.mxu0 0.0
    %444 = vmatpush1.msra.mxu0 %v392
    %445 = vmatprep.subr.mxu0 0.0
    %446 = vmatpush1.msra.mxu0 %v393
    %447 = vmatprep.subr.mxu0 0.0
    %448 = vmatpush1.msra.mxu0 %v394
    %449 = vmatprep.subr.mxu0 0.0
    %450 = vmatpush1.msra.mxu0 %v395
    %451 = vmatprep.subr.mxu0 0.0
    %452 = vmatpush1.msra.mxu0 %v396
    %453 = vmatprep.subr.mxu0 0.0
    %454 = vmatpush1.msra.mxu0 %v397
    %455 = vmatprep.subr.mxu0 0.0
    %456 = vmatpush1.msra.mxu0 %v398
    %457 = vmatprep.subr.mxu0 0.0
    %458 = vmatpush1.msra.mxu0 %v399
    %459 = vmatprep.subr.mxu0 0.0
    %460 = vmatpush1.msra.mxu0 %v400
    %461 = vmatprep.subr.mxu0 0.0
    %462 = vmatpush1.msra.mxu0 %v401
    %463 = vmatprep.subr.mxu0 0.0
    %464 = vmatpush1.msra.mxu0 %v402
    %465 = vmatprep.subr.mxu0 0.0
    %466 = vmatpush1.msra.mxu0 %v403
    %467 = vmatprep.subr.mxu0 0.0
    %468 = vmatpush1.msra.mxu0 %v404
    %469 = vmatprep.mubr.f32.mxu0 %v174
    %470 = vmatmul.mubr.f32.gmra.mrb[0].mxu0 %v172
    %v471 = vpop.f32.mrb[0].mxu0
    %v472 = vadd.f32 0.0, %v471
    %v473 = vpop.f32.mrb[0].mxu0
    %474 = vmatprep.mubr.f32.mxu0 %v180
    %475 = vmatmul.mubr.f32.gmra.mrb[0].mxu0 %v178
    %v476 = vpop.f32.mrb[0].mxu0
    %v477 = vadd.f32 0.0, %v476
    %v478 = vpop.f32.mrb[0].mxu0
    %479 = vmatprep.mubr.f32.mxu0 %v371
    %480 = vmatmul.mubr.f32.gmra.mrb[0].mxu0 %v369
    %v481 = vpop.f32.mrb[0].mxu0
    %v482 = vadd.f32 0.0, %v481
    %v483 = vpop.f32.mrb[0].mxu0
    %484 = vdwg.mxu0
    %485 = vadd.xlane.f32.xlu0 %v482
    %v486 = vpop.xlane.xlu0 %485
    %v487 = vmul.f32 %v482, %v482
    %488 = vadd.xlane.f32.xlu0 %v487
    %v489 = vpop.xlane.xlu0 %488
    %v490 = vmul.f32 %v486, 0.015625
    %v491 = vmul.f32 %v489, 0.015625
    %v492 = vmul.f32 %v490, %v490
    %v493 = vsub.f32 %v491, %v492
    %v494 = vmax.f32 %v493, 0.0
    %v495 = vsub.f32 %v482, %v490
    %v496 = vadd.f32 %v494, 1e-05
    %v497 = vrsqrt.pop %v496
    %v498 = vmul.f32 %v495, %v497
    %500 = vset.pattern.permute.xlu0 0
    %501 = vperm.xlu0 %500, %v60
    %v502 = vpop.permute.xlu0 %501
    %v504 = vmul.f32 %v498, %v502
    %506 = vset.pattern.permute.xlu0 0
    %507 = vperm.xlu0 %506, %v62
    %v508 = vpop.permute.xlu0 %507
    %v510 = vadd.f32 %v504, %v508
    %vm511 = vcmp.ge.f32.partialorder %v510, 0.0
    %v512 = vmul.f32 %v510, 0.2
    %v513 = vsel %vm511, %v510, %v512
    %514 = vrot.lane.b32.xlu0 %v513, 8
    %v515 = vpop.permute.xlu0 %514
    %516 = vrot.lane.b32.xlu0 %v513, 120
    %v517 = vpop.permute.xlu0 %516
    %518 = vrot.lane.b32.xlu0 %v515, 1
    %v519 = vpop.permute.xlu0 %518
    %520 = vrot.lane.b32.xlu0 %v513, 1
    %v521 = vpop.permute.xlu0 %520
    %522 = vrot.lane.b32.xlu0 %v517, 1
    %v523 = vpop.permute.xlu0 %522
    %524 = vrot.lane.b32.xlu0 %v515, 127
    %v525 = vpop.permute.xlu0 %524
    %526 = vrot.lane.b32.xlu0 %v513, 127
    %v527 = vpop.permute.xlu0 %526
    %528 = vrot.lane.b32.xlu0 %v517, 127
    %v529 = vpop.permute.xlu0 %528
    %v530 = vmul.f32 %v519, %v86
    %v531 = vmul.f32 %v521, %v87
    %v532 = vmul.f32 %v523, %v88
    %v533 = vmul.f32 %v515, %v89
    %v534 = vmul.f32 %v513, %v90
    %v535 = vmul.f32 %v517, %v91
    %v536 = vmul.f32 %v525, %v92
    %v537 = vmul.f32 %v527, %v93
    %v538 = vmul.f32 %v529, %v94
    %540 = vset.pattern.permute.xlu0 0
    %541 = vperm.xlu0 %540, %v54
    %v542 = vpop.permute.xlu0 %541
    %545 = vset.pattern.permute.xlu0 0
    %546 = vperm.xlu0 %545, %v55
    %v547 = vpop.permute.xlu0 %546
    %v550 = vsel %vm298, %v65, 0
    %v553 = vsel %vm298, %v66, 0
    %555 = vmatprep.subr.mxu0 0.0
    %556 = vmatpush1.msra.mxu0 %v530
    %557 = vmatprep.subr.mxu0 0.0
    %558 = vmatpush1.msra.mxu0 %v531
    %559 = vmatprep.subr.mxu0 0.0
    %560 = vmatpush1.msra.mxu0 %v532
    %561 = vmatprep.subr.mxu0 0.0
    %562 = vmatpush1.msra.mxu0 %v533
    %563 = vmatprep.subr.mxu0 0.0
    %564 = vmatpush1.msra.mxu0 %v534
    %565 = vmatprep.subr.mxu0 0.0
    %566 = vmatpush1.msra.mxu0 %v535
    %567 = vmatprep.subr.mxu0 0.0
    %568 = vmatpush1.msra.mxu0 %v536
    %569 = vmatprep.subr.mxu0 0.0
    %570 = vmatpush1.msra.mxu0 %v537
    %571 = vmatprep.subr.mxu0 0.0
    %572 = vmatpush1.msra.mxu0 %v538
    %573 = vmatprep.subr.mxu0 0.0
    %574 = vmatpush1.msra.mxu0 0.0
    %575 = vmatprep.subr.mxu0 0.0
    %576 = vmatpush1.msra.mxu0 0.0
    %577 = vmatprep.subr.mxu0 0.0
    %578 = vmatpush1.msra.mxu0 0.0
    %579 = vmatprep.subr.mxu0 0.0
    %580 = vmatpush1.msra.mxu0 0.0
    %581 = vmatprep.subr.mxu0 0.0
    %582 = vmatpush1.msra.mxu0 0.0
    %583 = vmatprep.subr.mxu0 0.0
    %584 = vmatpush1.msra.mxu0 0.0
    %585 = vmatprep.subr.mxu0 0.0
    %586 = vmatpush1.msra.mxu0 0.0
    %587 = vmatprep.subr.mxu0 0.0
    %588 = vmatpush1.msra.mxu0 0.0
    %589 = vmatprep.subr.mxu0 0.0
    %590 = vmatpush1.msra.mxu0 0.0
    %591 = vmatprep.subr.mxu0 0.0
    %592 = vmatpush1.msra.mxu0 0.0
    %593 = vmatprep.subr.mxu0 0.0
    %594 = vmatpush1.msra.mxu0 0.0
    %595 = vmatprep.subr.mxu0 0.0
    %596 = vmatpush1.msra.mxu0 0.0
    %597 = vmatprep.subr.mxu0 0.0
    %598 = vmatpush1.msra.mxu0 0.0
    %599 = vmatprep.subr.mxu0 0.0
    %600 = vmatpush1.msra.mxu0 0.0
    %601 = vmatprep.subr.mxu0 0.0
    %602 = vmatpush1.msra.mxu0 0.0
    %603 = vmatprep.subr.mxu0 0.0
    %604 = vmatpush1.msra.mxu0 0.0
    %605 = vmatprep.subr.mxu0 0.0
    %606 = vmatpush1.msra.mxu0 0.0
    %607 = vmatprep.subr.mxu0 0.0
    %608 = vmatpush1.msra.mxu0 0.0
    %609 = vmatprep.subr.mxu0 0.0
    %610 = vmatpush1.msra.mxu0 0.0
    %611 = vmatprep.subr.mxu0 0.0
    %612 = vmatpush1.msra.mxu0 0.0
    %613 = vmatprep.subr.mxu0 0.0
    %614 = vmatpush1.msra.mxu0 0.0
    %615 = vmatprep.subr.mxu0 0.0
    %616 = vmatpush1.msra.mxu0 0.0
    %617 = vmatprep.subr.mxu0 0.0
    %618 = vmatpush1.msra.mxu0 0.0
    %619 = vmatprep.mubr.f32.mxu0 0.0
    %620 = vmatmul.mubr.f32.gmra.mrb[0].mxu0 %v550
    %v621 = vpop.f32.mrb[0].mxu0
    %v622 = vadd.f32 %v542, %v621
    %v623 = vpop.f32.mrb[0].mxu0
    %624 = vmatprep.mubr.f32.mxu0 0.0
    %625 = vmatmul.mubr.f32.gmra.mrb[0].mxu0 %v553
    %v626 = vpop.f32.mrb[0].mxu0
    %v627 = vadd.f32 %v547, %v626
    %v628 = vpop.f32.mrb[0].mxu0
    %629 = vdwg.mxu0
    %v630 = vadd.f32 %v472, %v622
    %v631 = vadd.f32 %v477, %v627
    %v632 = vmul.f32 %v630, 0.70710677
    %v633 = vmul.f32 %v631, 0.70710677
    %634 = vst [vmem:[#allocation7] sm:$0xff] %v632
    %635 = vst [vmem:[#allocation7 + $0x8] sm:$0xff] %v633
    // Predicated region
    $region30: #{tpu_custom_call.1} parent=1 // pred_check
      _
    $region31: #{tpu_custom_call.1} parent=1 // pred_check_branch
      %637 = sbr.rel (0) target = $region33
    $region32: #{tpu_custom_call.1} parent=1 // pred_region
      %s639 = ssub.s32 256, 256
      %640 = vsyncadd [#allocation4], %s639
      %s641 = sshll.u32 [#allocation7], 4
      %s642 = int_to_ptr.vmem [resolvable:$true] %s641
      %647 = dma.vmem_to_hbm [thread:$0]  %s642, 256, %s5, [#allocation4], 128, 128, 8
    $region33: #{tpu_custom_call.1} parent=1 // pred_fallthru
      _
    // Predicated region
    $region34: #{tpu_custom_call.1} parent=1 // pred_check
      _
    $region35: #{tpu_custom_call.1} parent=1 // pred_check_branch
      %649 = sbr.rel (0) target = $region37
    $region36: #{tpu_custom_call.1} parent=1 // pred_region
      %650 = dma.done [#allocation4], 256
    $region37: #{tpu_custom_call.1} parent=1 // pred_fallthru
      _
    %651 = vsyncpa [#allocation3], 1
    %652 = vsyncpa [#allocation6], 1
    %653 = vsyncpa [#allocation4], 1

</llo_original>
